<compile_context>
chip_gen: v7x
topology: tpu7x:2x2x1
jax: 0.10.0
libtpu: 0.0.40
codegen_flags: <defaults>
</compile_context>

<pallas_src>
import jax
import jax.numpy as jnp
from jax.experimental import pallas as pl
from jax.experimental.pallas import tpu as pltpu

EMBED_DIM = 16     # embedding_dimension
HIDDEN_DIM = 128   # hidden_dimension
OUT_DIM = 2        # out_dim
NEG_SLOPE = 0.01   # nn.LeakyReLU default negative_slope


def _leaky_relu(x):
    return jnp.where(x > 0, x, NEG_SLOPE * x)


def gcn_forward_kernel(z_ref, a_hat_ref,
                       w_in_ref, b_in_ref,
                       w_g1_ref, b_g1_ref,
                       w_g2f_ref, b_g2f_ref,
                       w_out_ref, b_out_ref,
                       out_ref):
    gn = a_hat_ref.shape[0]            # G*N nodes in this group

    # --- fused input projection (both branches share linear_relu_input) ----
    # rows [0:GN)   = mask_feature            (GCN branch)
    # rows [GN:2GN) = feature - mask_feature  (mask branch)
    h = _leaky_relu(
        jnp.dot(z_ref[...], w_in_ref[...], preferred_element_type=jnp.float32)
        + b_in_ref[...])               # (2*GN, H) f32, kept in vregs (no slab)

    h_gcn = h[0:gn, :]
    h_msk = h[gn:2 * gn, :]

    a_hat = a_hat_ref[...]             # (GN, GN) bf16 block-diagonal

    # --- gcn1: A_hat @ (x @ W1) + b1  (bf16 MXU, f32 accumulate) -----------
    xw1 = jnp.dot(h_gcn.astype(jnp.bfloat16), w_g1_ref[...],
                  preferred_element_type=jnp.float32)
    x1 = (jnp.dot(a_hat, xw1.astype(jnp.bfloat16),
                  preferred_element_type=jnp.float32) + b_g1_ref[...])

    # F.dropout(p=0.3): identity in eval mode.
    # TODO(synk): training-mode dropout would need pltpu.prng_seed / prng_random_bits.

    # --- gcn2 folded with linear_output2 ------------------------------------
    # A_hat @ (x @ (W_g2 @ W_out)) + (b_g2 @ W_out + b_out)
    xw2 = jnp.dot(x1.astype(jnp.bfloat16), w_g2f_ref[...],
                  preferred_element_type=jnp.float32)          # (GN, OUT)
    x_out = (jnp.dot(a_hat, xw2.astype(jnp.bfloat16),
                     preferred_element_type=jnp.float32) + b_g2f_ref[...])

    # --- mask branch output projection --------------------------------------
    m_out = (jnp.dot(h_msk.astype(jnp.bfloat16), w_out_ref[...],
                     preferred_element_type=jnp.float32) + b_out_ref[...])

    # `aplha` in the original module is computed but never used -> omitted.
    out_ref[...] = x_out * m_out


def gcn_forward(mask_feature, feature, a_hat, params, graphs_per_step=None):
    """mask_feature/feature: (B, N, EMBED); a_hat: (B, N, N) normalized adjacency.

    graphs_per_step: graphs fused into one grid step (default: whole batch,
    i.e. a single step -- best on single-TC v5e/v6e).  On v7x, pass B // 2 so
    the two resulting steps shard across the two TensorCores.
    """
    B, N, E = mask_feature.shape
    assert E == EMBED_DIM
    G = B if graphs_per_step is None else graphs_per_step
    assert B % G == 0
    n_groups = B // G
    GN = G * N

    mask_feature = mask_feature.astype(jnp.float32)
    feature = feature.astype(jnp.float32)

    # Pre-stack the two shared-weight branches per group (avoids an in-kernel
    # concat): rows [0:GN) = mask_feature, [GN:2GN) = feature - mask_feature.
    m = mask_feature.reshape(n_groups, GN, EMBED_DIM)
    d = (feature - mask_feature).reshape(n_groups, GN, EMBED_DIM)
    z = jnp.concatenate([m, d], axis=1).astype(jnp.bfloat16)   # (n_groups, 2GN, E)

    # Block-diagonal normalized adjacency per group (bf16: native MXU rate,
    # half the DMA/VMEM bytes).  Off-diagonal zeros are free MACs.
    a = a_hat.astype(jnp.bfloat16).reshape(n_groups, G, N, N)
    a_blk = jnp.zeros((n_groups, GN, GN), jnp.bfloat16)
    for i in range(G):
        a_blk = a_blk.at[:, i * N:(i + 1) * N, i * N:(i + 1) * N].set(a[:, i])

    # Fold linear_output2 into gcn2 (no nonlinearity in between, eval mode);
    # cast all matmul weights to bf16, keep biases f32 for the VPU adds.
    w_g2f = params["w_g2"] @ params["w_out"]                       # (H, OUT)
    b_g2f = params["b_g2"] @ params["w_out"] + params["b_out"]     # (1, OUT)
    weight_args = (
        params["w_in"].astype(jnp.bfloat16), params["b_in"],
        params["w_g1"].astype(jnp.bfloat16), params["b_g1"],
        w_g2f.astype(jnp.bfloat16), b_g2f,
        params["w_out"].astype(jnp.bfloat16), params["b_out"],
    )

    def pinned(shape):
        # Same block index every grid step -> weights stay VMEM-resident.
        return pl.BlockSpec(shape, lambda g: (0, 0))

    grid_spec = pltpu.PrefetchScalarGridSpec(
        num_scalar_prefetch=0,
        grid=(n_groups,),
        in_specs=[
            pl.BlockSpec((None, 2 * GN, EMBED_DIM), lambda g: (g, 0, 0)),  # z (bf16)
            pl.BlockSpec((None, GN, GN), lambda g: (g, 0, 0)),             # A_hat (bf16)
            *[pinned(w.shape) for w in weight_args],
        ],
        out_specs=pl.BlockSpec((None, GN, OUT_DIM), lambda g: (g, 0, 0)),
    )

    out = pl.pallas_call(
        gcn_forward_kernel,
        out_shape=jax.ShapeDtypeStruct((n_groups, GN, OUT_DIM), jnp.float32),
        grid_spec=grid_spec,
        compiler_params=pltpu.CompilerParams(
            dimension_semantics=("parallel",)),   # shards groups across v7x's 2 TCs
    )(z, a_blk, *weight_args)

    return out.reshape(B, N, OUT_DIM)


def build_normalized_adjacency(edge_index, num_nodes):
    """Dense D^-1/2 (A + I) D^-1/2 matching torch_geometric GCNConv gcn_norm.

    Self-loops are only added where missing (add_remaining_self_loops semantics),
    so graphs that already contain loops are not double-counted.
    """
    src, dst = edge_index[0], edge_index[1]
    a = jnp.zeros((num_nodes, num_nodes), jnp.float32).at[dst, src].add(1.0)
    diag = jnp.diagonal(a)
    a = a.at[jnp.diag_indices(num_nodes)].set(jnp.maximum(diag, 1.0))
    deg = a.sum(axis=1)                            # in-degree of target nodes
    dinv = jnp.where(deg > 0, 1.0 / jnp.sqrt(deg), 0.0)
    return dinv[:, None] * a * dinv[None, :]


def init_params(key):
    ks = jax.random.split(key, 8)

    def lin(kw, kb, fan_in, fan_out):
        bound = 1.0 / jnp.sqrt(fan_in)
        w = jax.random.uniform(kw, (fan_in, fan_out), jnp.float32, -bound, bound)
        b = jax.random.uniform(kb, (1, fan_out), jnp.float32, -bound, bound)
        return w, b

    w_in, b_in = lin(ks[0], ks[1], EMBED_DIM, HIDDEN_DIM)      # linear_relu_input
    w_g1, b_g1 = lin(ks[2], ks[3], HIDDEN_DIM, HIDDEN_DIM)     # gcn1
    w_g2, b_g2 = lin(ks[4], ks[5], HIDDEN_DIM, HIDDEN_DIM)     # gcn2
    w_out, b_out = lin(ks[6], ks[7], HIDDEN_DIM, OUT_DIM)      # linear_output2
    return dict(w_in=w_in, b_in=b_in, w_g1=w_g1, b_g1=b_g1,
                w_g2=w_g2, b_g2=b_g2, w_out=w_out, b_out=b_out)


def reference_forward(mask_feature, feature, a_hat, p):
    """Pure-JAX reference mirroring the kernel's bf16 quantization points
    (including the W_out-into-W_g2 fold)."""
    bf16 = jnp.bfloat16
    w_in = p["w_in"].astype(bf16)
    w_g1 = p["w_g1"].astype(bf16)
    w_g2f = (p["w_g2"] @ p["w_out"]).astype(bf16)
    b_g2f = p["b_g2"] @ p["w_out"] + p["b_out"]
    w_out = p["w_out"].astype(bf16)
    a = a_hat.astype(bf16)

    def dot(x, w):
        return jnp.einsum("bij,jk->bik", x, w,
                          preferred_element_type=jnp.float32)

    def agg(a, x):
        return jnp.einsum("bij,bjk->bik", a, x,
                          preferred_element_type=jnp.float32)

    mf = mask_feature.astype(jnp.float32)
    df = (feature.astype(jnp.float32) - mf)

    h_gcn = _leaky_relu(dot(mf.astype(bf16), w_in) + p["b_in"])
    h_msk = _leaky_relu(dot(df.astype(bf16), w_in) + p["b_in"])

    xw1 = dot(h_gcn.astype(bf16), w_g1)
    x1 = agg(a, xw1.astype(bf16)) + p["b_g1"]
    # dropout: eval-mode identity
    xw2 = dot(x1.astype(bf16), w_g2f)
    x_out = agg(a, xw2.astype(bf16)) + b_g2f
    m_out = dot(h_msk.astype(bf16), w_out) + p["b_out"]
    return x_out * m_out


if __name__ == "__main__":
    B, N = 4, 32   # batch of graphs, nodes per graph

    key = jax.random.PRNGKey(0)
    k_mask, k_feat, k_param = jax.random.split(key, 3)

    mask_feature = jax.random.normal(k_mask, (B, N, EMBED_DIM), jnp.float32)
    feature = jax.random.normal(k_feat, (B, N, EMBED_DIM), jnp.float32)

    # Deterministic per-graph ring graphs (stride b+1, both directions);
    # edge_type is unused by the forward pass, exactly as in the module.
    a_hats = []
    for b in range(B):
        idx = jnp.arange(N)
        nbr = (idx + 1 + b) % N
        src = jnp.concatenate([idx, nbr])
        dst = jnp.concatenate([nbr, idx])
        edge_index = jnp.stack([src, dst])
        a_hats.append(build_normalized_adjacency(edge_index, N))
    a_hat = jnp.stack(a_hats)                       # (B, N, N) f32

    params = init_params(k_param)

    out = gcn_forward(mask_feature, feature, a_hat, params)   # whole batch, 1 step
    out = jax.block_until_ready(out)

    ref = reference_forward(mask_feature, feature, a_hat, params)
    assert out.shape == (B, N, OUT_DIM)
    max_err = float(jnp.max(jnp.abs(out - ref)))
    assert jnp.allclose(out, ref, atol=2e-2, rtol=2e-2), max_err

    print("KERNEL_OK")
</pallas_src>

<mosaic_0001>
module attributes {stable_mosaic.version = 11 : i64} {
  func.func @gcn_forward_kernel(%arg0: i32, %arg1: memref<1x256x16xbf16, #tpu.memory_space<vmem>>, %arg2: memref<1x128x128xbf16, #tpu.memory_space<vmem>>, %arg3: memref<16x128xbf16, #tpu.memory_space<vmem>>, %arg4: memref<1x128xf32, #tpu.memory_space<vmem>>, %arg5: memref<128x128xbf16, #tpu.memory_space<vmem>>, %arg6: memref<1x128xf32, #tpu.memory_space<vmem>>, %arg7: memref<128x2xbf16, #tpu.memory_space<vmem>>, %arg8: memref<1x2xf32, #tpu.memory_space<vmem>>, %arg9: memref<128x2xbf16, #tpu.memory_space<vmem>>, %arg10: memref<1x2xf32, #tpu.memory_space<vmem>>, %arg11: memref<1x128x2xf32, #tpu.memory_space<vmem>>) attributes {dimension_semantics = [#tpu.dimension_semantics<parallel>], iteration_bounds = array<i64: 1>, scalar_prefetch = 0 : i64, scratch_operands = 0 : i64, tpu.core_type = #tpu.core_type<tc>, window_params = [{transform_indices = @transform_0, window_bounds = array<i64: 1, 256, 16>}, {transform_indices = @transform_1, window_bounds = array<i64: 1, 128, 128>}, {pipeline_mode = #tpu.pipeline_mode<synchronous>, transform_indices = @transform_2, window_bounds = array<i64: 16, 128>}, {pipeline_mode = #tpu.pipeline_mode<synchronous>, transform_indices = @transform_3, window_bounds = array<i64: 1, 128>}, {pipeline_mode = #tpu.pipeline_mode<synchronous>, transform_indices = @transform_4, window_bounds = array<i64: 128, 128>}, {pipeline_mode = #tpu.pipeline_mode<synchronous>, transform_indices = @transform_5, window_bounds = array<i64: 1, 128>}, {pipeline_mode = #tpu.pipeline_mode<synchronous>, transform_indices = @transform_6, window_bounds = array<i64: 128, 2>}, {pipeline_mode = #tpu.pipeline_mode<synchronous>, transform_indices = @transform_7, window_bounds = array<i64: 1, 2>}, {pipeline_mode = #tpu.pipeline_mode<synchronous>, transform_indices = @transform_8, window_bounds = array<i64: 128, 2>}, {pipeline_mode = #tpu.pipeline_mode<synchronous>, transform_indices = @transform_9, window_bounds = array<i64: 1, 2>}, {transform_indices = @transform_10, window_bounds = array<i64: 1, 128, 2>}]} {
    %c0 = arith.constant 0 : index
    %c0_0 = arith.constant 0 : index
    %c0_1 = arith.constant 0 : index
    %0 = vector.load %arg1[%c0, %c0_0, %c0_1] : memref<1x256x16xbf16, #tpu.memory_space<vmem>>, vector<1x256x16xbf16>
    %1 = vector.shape_cast %0 : vector<1x256x16xbf16> to vector<256x16xbf16>
    %c0_2 = arith.constant 0 : index
    %c0_3 = arith.constant 0 : index
    %2 = vector.load %arg3[%c0_2, %c0_3] : memref<16x128xbf16, #tpu.memory_space<vmem>>, vector<16x128xbf16>
    %cst = arith.constant dense<0.000000e+00> : vector<256x128xf32>
    %3 = tpu.matmul %1, %2, %cst {dimension_numbers = #tpu.dot_dimension_numbers<[1], [0], [0], [1], [0, 0, 1, 1], [], []>} : vector<256x16xbf16>, vector<16x128xbf16>, vector<256x128xf32> -> vector<256x128xf32>
    %c0_4 = arith.constant 0 : index
    %c0_5 = arith.constant 0 : index
    %4 = vector.load %arg4[%c0_4, %c0_5] : memref<1x128xf32, #tpu.memory_space<vmem>>, vector<1x128xf32>
    %5 = vector.broadcast %4 : vector<1x128xf32> to vector<256x128xf32>
    %6 = arith.addf %3, %5 : vector<256x128xf32>
    %cst_6 = arith.constant 0.000000e+00 : f32
    %7 = vector.broadcast %cst_6 : f32 to vector<256x128xf32>
    %8 = arith.cmpf ogt, %6, %7 : vector<256x128xf32>
    %cst_7 = arith.constant 0.00999999977 : f32
    %9 = vector.broadcast %cst_7 : f32 to vector<256x128xf32>
    %10 = arith.mulf %9, %6 : vector<256x128xf32>
    %11 = arith.select %8, %6, %10 : vector<256x128xi1>, vector<256x128xf32>
    %12 = vector.extract_strided_slice %11 {offsets = [0, 0], sizes = [128, 128], strides = [1, 1]} : vector<256x128xf32> to vector<128x128xf32>
    %13 = vector.extract_strided_slice %11 {offsets = [128, 0], sizes = [128, 128], strides = [1, 1]} : vector<256x128xf32> to vector<128x128xf32>
    %c0_8 = arith.constant 0 : index
    %c0_9 = arith.constant 0 : index
    %c0_10 = arith.constant 0 : index
    %14 = vector.load %arg2[%c0_8, %c0_9, %c0_10] : memref<1x128x128xbf16, #tpu.memory_space<vmem>>, vector<1x128x128xbf16>
    %15 = vector.shape_cast %14 : vector<1x128x128xbf16> to vector<128x128xbf16>
    %16 = arith.truncf %12 : vector<128x128xf32> to vector<128x128xbf16>
    %c0_11 = arith.constant 0 : index
    %c0_12 = arith.constant 0 : index
    %17 = vector.load %arg5[%c0_11, %c0_12] : memref<128x128xbf16, #tpu.memory_space<vmem>>, vector<128x128xbf16>
    %cst_13 = arith.constant dense<0.000000e+00> : vector<128x128xf32>
    %18 = tpu.matmul %16, %17, %cst_13 {dimension_numbers = #tpu.dot_dimension_numbers<[1], [0], [0], [1], [0, 0, 1, 1], [], []>} : vector<128x128xbf16>, vector<128x128xbf16>, vector<128x128xf32> -> vector<128x128xf32>
    %19 = arith.truncf %18 : vector<128x128xf32> to vector<128x128xbf16>
    %cst_14 = arith.constant dense<0.000000e+00> : vector<128x128xf32>
    %20 = tpu.matmul %15, %19, %cst_14 {dimension_numbers = #tpu.dot_dimension_numbers<[1], [0], [0], [1], [0, 0, 1, 1], [], []>} : vector<128x128xbf16>, vector<128x128xbf16>, vector<128x128xf32> -> vector<128x128xf32>
    %c0_15 = arith.constant 0 : index
    %c0_16 = arith.constant 0 : index
    %21 = vector.load %arg6[%c0_15, %c0_16] : memref<1x128xf32, #tpu.memory_space<vmem>>, vector<1x128xf32>
    %22 = vector.broadcast %21 : vector<1x128xf32> to vector<128x128xf32>
    %23 = arith.addf %20, %22 : vector<128x128xf32>
    %24 = arith.truncf %23 : vector<128x128xf32> to vector<128x128xbf16>
    %c0_17 = arith.constant 0 : index
    %c0_18 = arith.constant 0 : index
    %25 = vector.load %arg7[%c0_17, %c0_18] : memref<128x2xbf16, #tpu.memory_space<vmem>>, vector<128x2xbf16>
    %cst_19 = arith.constant dense<0.000000e+00> : vector<128x2xf32>
    %26 = tpu.matmul %24, %25, %cst_19 {dimension_numbers = #tpu.dot_dimension_numbers<[1], [0], [0], [1], [0, 0, 1, 1], [], []>} : vector<128x128xbf16>, vector<128x2xbf16>, vector<128x2xf32> -> vector<128x2xf32>
    %27 = arith.truncf %26 : vector<128x2xf32> to vector<128x2xbf16>
    %cst_20 = arith.constant dense<0.000000e+00> : vector<128x2xf32>
    %28 = tpu.matmul %15, %27, %cst_20 {dimension_numbers = #tpu.dot_dimension_numbers<[1], [0], [0], [1], [0, 0, 1, 1], [], []>} : vector<128x128xbf16>, vector<128x2xbf16>, vector<128x2xf32> -> vector<128x2xf32>
    %c0_21 = arith.constant 0 : index
    %c0_22 = arith.constant 0 : index
    %29 = vector.load %arg8[%c0_21, %c0_22] : memref<1x2xf32, #tpu.memory_space<vmem>>, vector<1x2xf32>
    %30 = vector.broadcast %29 : vector<1x2xf32> to vector<128x2xf32>
    %31 = arith.addf %28, %30 : vector<128x2xf32>
    %32 = arith.truncf %13 : vector<128x128xf32> to vector<128x128xbf16>
    %c0_23 = arith.constant 0 : index
    %c0_24 = arith.constant 0 : index
    %33 = vector.load %arg9[%c0_23, %c0_24] : memref<128x2xbf16, #tpu.memory_space<vmem>>, vector<128x2xbf16>
    %cst_25 = arith.constant dense<0.000000e+00> : vector<128x2xf32>
    %34 = tpu.matmul %32, %33, %cst_25 {dimension_numbers = #tpu.dot_dimension_numbers<[1], [0], [0], [1], [0, 0, 1, 1], [], []>} : vector<128x128xbf16>, vector<128x2xbf16>, vector<128x2xf32> -> vector<128x2xf32>
    %c0_26 = arith.constant 0 : index
    %c0_27 = arith.constant 0 : index
    %35 = vector.load %arg10[%c0_26, %c0_27] : memref<1x2xf32, #tpu.memory_space<vmem>>, vector<1x2xf32>
    %36 = vector.broadcast %35 : vector<1x2xf32> to vector<128x2xf32>
    %37 = arith.addf %34, %36 : vector<128x2xf32>
    %38 = arith.mulf %31, %37 : vector<128x2xf32>
    %c0_28 = arith.constant 0 : index
    %c0_29 = arith.constant 0 : index
    %c0_30 = arith.constant 0 : index
    %39 = vector.load %arg11[%c0_28, %c0_29, %c0_30] : memref<1x128x2xf32, #tpu.memory_space<vmem>>, vector<1x128x2xf32>
    %40 = vector.shape_cast %39 : vector<1x128x2xf32> to vector<128x2xf32>
    %41 = vector.shape_cast %38 : vector<128x2xf32> to vector<1x128x2xf32>
    tpu.vector_store %arg11[%c0_28, %c0_29, %c0_30], %41 {strides = array<i32>} : memref<1x128x2xf32, #tpu.memory_space<vmem>>, vector<1x128x2xf32>,
    return
  }
  func.func @transform_0(%arg0: i32) -> (i32, i32, i32) {
    %c0_i32 = arith.constant 0 : i32
    %c0_i32_0 = arith.constant 0 : i32
    %c0_i32_1 = arith.constant 0 : i32
    return %arg0, %c0_i32, %c0_i32_0 : i32, i32, i32
  }
  func.func @transform_1(%arg0: i32) -> (i32, i32, i32) {
    %c0_i32 = arith.constant 0 : i32
    %c0_i32_0 = arith.constant 0 : i32
    %c0_i32_1 = arith.constant 0 : i32
    return %arg0, %c0_i32, %c0_i32_0 : i32, i32, i32
  }
  func.func @transform_2(%arg0: i32) -> (i32, i32) {
    %c0_i32 = arith.constant 0 : i32
    %c0_i32_0 = arith.constant 0 : i32
    %c0_i32_1 = arith.constant 0 : i32
    return %c0_i32, %c0_i32_0 : i32, i32
  }
  func.func @transform_3(%arg0: i32) -> (i32, i32) {
    %c0_i32 = arith.constant 0 : i32
    %c0_i32_0 = arith.constant 0 : i32
    %c0_i32_1 = arith.constant 0 : i32
    return %c0_i32, %c0_i32_0 : i32, i32
  }
  func.func @transform_4(%arg0: i32) -> (i32, i32) {
    %c0_i32 = arith.constant 0 : i32
    %c0_i32_0 = arith.constant 0 : i32
    %c0_i32_1 = arith.constant 0 : i32
    return %c0_i32, %c0_i32_0 : i32, i32
  }
  func.func @transform_5(%arg0: i32) -> (i32, i32) {
    %c0_i32 = arith.constant 0 : i32
    %c0_i32_0 = arith.constant 0 : i32
    %c0_i32_1 = arith.constant 0 : i32
    return %c0_i32, %c0_i32_0 : i32, i32
  }
  func.func @transform_6(%arg0: i32) -> (i32, i32) {
    %c0_i32 = arith.constant 0 : i32
    %c0_i32_0 = arith.constant 0 : i32
    %c0_i32_1 = arith.constant 0 : i32
    return %c0_i32, %c0_i32_0 : i32, i32
  }
  func.func @transform_7(%arg0: i32) -> (i32, i32) {
    %c0_i32 = arith.constant 0 : i32
    %c0_i32_0 = arith.constant 0 : i32
    %c0_i32_1 = arith.constant 0 : i32
    return %c0_i32, %c0_i32_0 : i32, i32
  }
  func.func @transform_8(%arg0: i32) -> (i32, i32) {
    %c0_i32 = arith.constant 0 : i32
    %c0_i32_0 = arith.constant 0 : i32
    %c0_i32_1 = arith.constant 0 : i32
    return %c0_i32, %c0_i32_0 : i32, i32
  }
  func.func @transform_9(%arg0: i32) -> (i32, i32) {
    %c0_i32 = arith.constant 0 : i32
    %c0_i32_0 = arith.constant 0 : i32
    %c0_i32_1 = arith.constant 0 : i32
    return %c0_i32, %c0_i32_0 : i32, i32
  }
  func.func @transform_10(%arg0: i32) -> (i32, i32, i32) {
    %c0_i32 = arith.constant 0 : i32
    %c0_i32_0 = arith.constant 0 : i32
    %c0_i32_1 = arith.constant 0 : i32
    return %arg0, %c0_i32, %c0_i32_0 : i32, i32, i32
  }
}

</mosaic_0001>

<llo_original>
// kernel: tpu_custom_call.1
$region0: #{tpu_custom_call.1}
  #allocation0 [shape = 'u32[]', space=smem, size = 0x4, offset = 0x4, fixed_abs, tag = 'smem constant byte address 0x4 - core index']
  #allocation1 [shape = 'u32[144,128]{1,0:T(1,128)}', space=vmem, size = 0x12000, scoped, tag = 'internal scratch']
  %s0 = inlined_call_operand.vmem [shape: bf16[1,256,16], index: 0, kind: input, shape index: {}]
  %s1 = inlined_call_operand.vmem [shape: bf16[1,128,128], index: 1, kind: input, shape index: {}]
  %s2 = inlined_call_operand.vmem [shape: bf16[16,128], index: 2, kind: input, shape index: {}]
  %s3 = inlined_call_operand.vmem [shape: f32[1,128], index: 3, kind: input, shape index: {}]
  %s4 = inlined_call_operand.vmem [shape: bf16[128,128], index: 4, kind: input, shape index: {}]
  %s5 = inlined_call_operand.vmem [shape: f32[1,128], index: 5, kind: input, shape index: {}]
  %s6 = inlined_call_operand.vmem [shape: bf16[128,2], index: 6, kind: input, shape index: {}]
  %s7 = inlined_call_operand.vmem [shape: f32[1,2], index: 7, kind: input, shape index: {}]
  %s8 = inlined_call_operand.vmem [shape: bf16[128,2], index: 8, kind: input, shape index: {}]
  %s9 = inlined_call_operand.vmem [shape: f32[1,2], index: 9, kind: input, shape index: {}]
  %s10 = inlined_call_operand.vmem [shape: f32[1,128,2], index: 10, kind: output, shape index: {}]
  %s11 = sld [smem:[#allocation0]]
  $region50: #{tpu_custom_call.1} parent=0
    _
  %s13 = ssub.s32 1, %s11
  %s14 = scalar_select 0, %s13, %s11
  // Predicated region
  $region2: #{tpu_custom_call.1} parent=0 // pred_check
    _
  $region3: #{tpu_custom_call.1} parent=0 // pred_check_branch
    %16 = sbr.rel (0) target = $region5
  $region4: #{tpu_custom_call.1} parent=0 // pred_region
    _
  $region5: #{tpu_custom_call.1} parent=0 // pred_fallthru
    _
  // Predicated region
  $region6: #{tpu_custom_call.1} parent=0 // pred_check
    _
  $region7: #{tpu_custom_call.1} parent=0 // pred_check_branch
    %18 = sbr.rel (0) target = $region9
  $region8: #{tpu_custom_call.1} parent=0 // pred_region
    _
  $region9: #{tpu_custom_call.1} parent=0 // pred_fallthru
    _
  // Predicated region
  $region10: #{tpu_custom_call.1} parent=0 // pred_check
    _
  $region11: #{tpu_custom_call.1} parent=0 // pred_check_branch
    %20 = sbr.rel (0) target = $region13
  $region12: #{tpu_custom_call.1} parent=0 // pred_region
    _
  $region13: #{tpu_custom_call.1} parent=0 // pred_fallthru
    _
  // Predicated region
  $region14: #{tpu_custom_call.1} parent=0 // pred_check
    _
  $region15: #{tpu_custom_call.1} parent=0 // pred_check_branch
    %22 = sbr.rel (0) target = $region17
  $region16: #{tpu_custom_call.1} parent=0 // pred_region
    _
  $region17: #{tpu_custom_call.1} parent=0 // pred_fallthru
    _
  // Predicated region
  $region18: #{tpu_custom_call.1} parent=0 // pred_check
    _
  $region19: #{tpu_custom_call.1} parent=0 // pred_check_branch
    %24 = sbr.rel (0) target = $region21
  $region20: #{tpu_custom_call.1} parent=0 // pred_region
    _
  $region21: #{tpu_custom_call.1} parent=0 // pred_fallthru
    _
  // Predicated region
  $region22: #{tpu_custom_call.1} parent=0 // pred_check
    _
  $region23: #{tpu_custom_call.1} parent=0 // pred_check_branch
    %26 = sbr.rel (0) target = $region25
  $region24: #{tpu_custom_call.1} parent=0 // pred_region
    _
  $region25: #{tpu_custom_call.1} parent=0 // pred_fallthru
    _
  // Predicated region
  $region26: #{tpu_custom_call.1} parent=0 // pred_check
    _
  $region27: #{tpu_custom_call.1} parent=0 // pred_check_branch
    %28 = sbr.rel (0) target = $region29
  $region28: #{tpu_custom_call.1} parent=0 // pred_region
    _
  $region29: #{tpu_custom_call.1} parent=0 // pred_fallthru
    _
  // Predicated region
  $region30: #{tpu_custom_call.1} parent=0 // pred_check
    _
  $region31: #{tpu_custom_call.1} parent=0 // pred_check_branch
    %30 = sbr.rel (0) target = $region33
  $region32: #{tpu_custom_call.1} parent=0 // pred_region
    _
  $region33: #{tpu_custom_call.1} parent=0 // pred_fallthru
    _
  // Predicated region
  $region34: #{tpu_custom_call.1} parent=0 // pred_check
    _
  $region35: #{tpu_custom_call.1} parent=0 // pred_check_branch
    %32 = sbr.rel (0) target = $region37
  $region36: #{tpu_custom_call.1} parent=0 // pred_region
    _
  $region37: #{tpu_custom_call.1} parent=0 // pred_fallthru
    _
  // Predicated region
  $region38: #{tpu_custom_call.1} parent=0 // pred_check
    _
  $region39: #{tpu_custom_call.1} parent=0 // pred_check_branch
    %34 = sbr.rel (0) target = $region41
  $region40: #{tpu_custom_call.1} parent=0 // pred_region
    _
  $region41: #{tpu_custom_call.1} parent=0 // pred_fallthru
    _
  %v36 = vld [vmem:[%s0] sm:$0xf]
  %v37 = vld [vmem:[%s0 + $0x4] sm:$0xf]
  %v38 = vld [vmem:[%s0 + $0x8] sm:$0xf]
  %v39 = vld [vmem:[%s0 + $0xc] sm:$0xf]
  %v40 = vld [vmem:[%s0 + $0x10] sm:$0xf]
  %v41 = vld [vmem:[%s0 + $0x14] sm:$0xf]
  %v42 = vld [vmem:[%s0 + $0x18] sm:$0xf]
  %v43 = vld [vmem:[%s0 + $0x1c] sm:$0xf]
  %v44 = vld [vmem:[%s0 + $0x20] sm:$0xf]
  %v45 = vld [vmem:[%s0 + $0x24] sm:$0xf]
  %v46 = vld [vmem:[%s0 + $0x28] sm:$0xf]
  %v47 = vld [vmem:[%s0 + $0x2c] sm:$0xf]
  %v48 = vld [vmem:[%s0 + $0x30] sm:$0xf]
  %v49 = vld [vmem:[%s0 + $0x34] sm:$0xf]
  %v50 = vld [vmem:[%s0 + $0x38] sm:$0xf]
  %v51 = vld [vmem:[%s0 + $0x3c] sm:$0xf]
  %v52 = vld [vmem:[%s0 + $0x40] sm:$0xf]
  %v53 = vld [vmem:[%s0 + $0x44] sm:$0xf]
  %v54 = vld [vmem:[%s0 + $0x48] sm:$0xf]
  %v55 = vld [vmem:[%s0 + $0x4c] sm:$0xf]
  %v56 = vld [vmem:[%s0 + $0x50] sm:$0xf]
  %v57 = vld [vmem:[%s0 + $0x54] sm:$0xf]
  %v58 = vld [vmem:[%s0 + $0x58] sm:$0xf]
  %v59 = vld [vmem:[%s0 + $0x5c] sm:$0xf]
  %v60 = vld [vmem:[%s0 + $0x60] sm:$0xf]
  %v61 = vld [vmem:[%s0 + $0x64] sm:$0xf]
  %v62 = vld [vmem:[%s0 + $0x68] sm:$0xf]
  %v63 = vld [vmem:[%s0 + $0x6c] sm:$0xf]
  %v64 = vld [vmem:[%s0 + $0x70] sm:$0xf]
  %v65 = vld [vmem:[%s0 + $0x74] sm:$0xf]
  %v66 = vld [vmem:[%s0 + $0x78] sm:$0xf]
  %v67 = vld [vmem:[%s0 + $0x7c] sm:$0xf]
  %v68 = vld [vmem:[%s2] sm:$0xf]
  %v69 = vld [vmem:[%s2 + $0x4] sm:$0xf]
  %v70 = vld [vmem:[%s3] sm:$0x1]
  %v72 = vlaneseq
  %v73 = vshrl.u32 %v72, 7
  %v74 = vsub.s32 0, %v73
  %v75 = vrot.slane %v70, %v74
  %v109 = vunpack.c.l.b16 %v36
  %v110 = vunpack.c.l.b16 %v37
  %v111 = vunpack.c.l.b16 %v38
  %v112 = vunpack.c.l.b16 %v39
  %v113 = vunpack.c.l.b16 %v40
  %v114 = vunpack.c.l.b16 %v41
  %v115 = vunpack.c.l.b16 %v42
  %v116 = vunpack.c.l.b16 %v43
  %v117 = vunpack.c.l.b16 %v44
  %v118 = vunpack.c.l.b16 %v45
  %v119 = vunpack.c.l.b16 %v46
  %v120 = vunpack.c.l.b16 %v47
  %v121 = vunpack.c.l.b16 %v48
  %v122 = vunpack.c.l.b16 %v49
  %v123 = vunpack.c.l.b16 %v50
  %v124 = vunpack.c.l.b16 %v51
  %v125 = vunpack.c.l.b16 %v52
  %v126 = vunpack.c.l.b16 %v53
  %v127 = vunpack.c.l.b16 %v54
  %v128 = vunpack.c.l.b16 %v55
  %v129 = vunpack.c.l.b16 %v56
  %v130 = vunpack.c.l.b16 %v57
  %v131 = vunpack.c.l.b16 %v58
  %v132 = vunpack.c.l.b16 %v59
  %v133 = vunpack.c.l.b16 %v60
  %v134 = vunpack.c.l.b16 %v61
  %v135 = vunpack.c.l.b16 %v62
  %v136 = vunpack.c.l.b16 %v63
  %v137 = vunpack.c.l.b16 %v64
  %v138 = vunpack.c.l.b16 %v65
  %v139 = vunpack.c.l.b16 %v66
  %v140 = vunpack.c.l.b16 %v67
  %v141 = vpack.c.b16 %v110, %v109
  %v142 = vpack.c.b16 %v112, %v111
  %v143 = vpack.c.b16 %v114, %v113
  %v144 = vpack.c.b16 %v116, %v115
  %v145 = vpack.c.b16 %v118, %v117
  %v146 = vpack.c.b16 %v120, %v119
  %v147 = vpack.c.b16 %v122, %v121
  %v148 = vpack.c.b16 %v124, %v123
  %v149 = vpack.c.b16 %v126, %v125
  %v150 = vpack.c.b16 %v128, %v127
  %v151 = vpack.c.b16 %v130, %v129
  %v152 = vpack.c.b16 %v132, %v131
  %v153 = vpack.c.b16 %v134, %v133
  %v154 = vpack.c.b16 %v136, %v135
  %v155 = vpack.c.b16 %v138, %v137
  %v156 = vpack.c.b16 %v140, %v139
  %v159 = vunpack.c.l.b16 %v68
  %v160 = vunpack.c.l.b16 %v69
  %v161 = vpack.c.b16 %v160, %v159
  %vm163 = vcmask 130048
  %v165 = vsel %vm163, %v141, 0
  %v168 = vsel %vm163, %v142, 0
  %v171 = vsel %vm163, %v143, 0
  %v174 = vsel %vm163, %v144, 0
  %v177 = vsel %vm163, %v145, 0
  %v180 = vsel %vm163, %v146, 0
  %v183 = vsel %vm163, %v147, 0
  %v186 = vsel %vm163, %v148, 0
  %v189 = vsel %vm163, %v149, 0
  %v192 = vsel %vm163, %v150, 0
  %v195 = vsel %vm163, %v151, 0
  %v198 = vsel %vm163, %v152, 0
  %v201 = vsel %vm163, %v153, 0
  %v204 = vsel %vm163, %v154, 0
  %v207 = vsel %vm163, %v155, 0
  %v210 = vsel %vm163, %v156, 0
  %212 = vmatprep.subr.bf16.mxu0 0
  %213 = vmatpush1.bf16.msra.mxu0 %v161
  %214 = vmatprep.subr.bf16.mxu0 0
  %215 = vmatpush1.bf16.msra.mxu0 0
  %216 = vmatprep.subr.bf16.mxu0 0
  %217 = vmatpush1.bf16.msra.mxu0 0
  %218 = vmatprep.subr.bf16.mxu0 0
  %219 = vmatpush1.bf16.msra.mxu0 0
  %220 = vmatprep.subr.bf16.mxu0 0
  %221 = vmatpush1.bf16.msra.mxu0 0
  %222 = vmatprep.subr.bf16.mxu0 0
  %223 = vmatpush1.bf16.msra.mxu0 0
  %224 = vmatprep.subr.bf16.mxu0 0
  %225 = vmatpush1.bf16.msra.mxu0 0
  %226 = vmatprep.subr.bf16.mxu0 0
  %227 = vmatpush1.bf16.msra.mxu0 0
  %228 = vmatprep.subr.bf16.mxu0 0
  %229 = vmatpush1.bf16.msra.mxu0 0
  %230 = vmatprep.subr.bf16.mxu0 0
  %231 = vmatpush1.bf16.msra.mxu0 0
  %232 = vmatprep.subr.bf16.mxu0 0
  %233 = vmatpush1.bf16.msra.mxu0 0
  %234 = vmatprep.subr.bf16.mxu0 0
  %235 = vmatpush1.bf16.msra.mxu0 0
  %236 = vmatprep.subr.bf16.mxu0 0
  %237 = vmatpush1.bf16.msra.mxu0 0
  %238 = vmatprep.subr.bf16.mxu0 0
  %239 = vmatpush1.bf16.msra.mxu0 0
  %240 = vmatprep.subr.bf16.mxu0 0
  %241 = vmatpush1.bf16.msra.mxu0 0
  %242 = vmatprep.subr.bf16.mxu0 0
  %243 = vmatpush1.bf16.msra.mxu0 0
  %244 = vmatprep.mubr.bf16.mxu0 0
  %245 = vmatmul.mubr.bf16.gmra.mrb[0].mxu0 %v165
  %v246 = vpop.f32.mrb[0].mxu0
  %v247 = vadd.f32 %v75, %v246
  %v248 = vpop.f32.mrb[0].mxu0
  %v249 = vpop.f32.mrb[0].mxu0
  %v250 = vadd.f32 %v75, %v249
  %v251 = vpop.f32.mrb[0].mxu0
  %252 = vmatprep.mubr.bf16.mxu0 0
  %253 = vmatmul.mubr.bf16.gmra.mrb[0].mxu0 %v168
  %v254 = vpop.f32.mrb[0].mxu0
  %v255 = vadd.f32 %v75, %v254
  %v256 = vpop.f32.mrb[0].mxu0
  %v257 = vpop.f32.mrb[0].mxu0
  %v258 = vadd.f32 %v75, %v257
  %v259 = vpop.f32.mrb[0].mxu0
  %260 = vmatprep.mubr.bf16.mxu0 0
  %261 = vmatmul.mubr.bf16.gmra.mrb[0].mxu0 %v171
  %v262 = vpop.f32.mrb[0].mxu0
  %v263 = vadd.f32 %v75, %v262
  %v264 = vpop.f32.mrb[0].mxu0
  %v265 = vpop.f32.mrb[0].mxu0
  %v266 = vadd.f32 %v75, %v265
  %v267 = vpop.f32.mrb[0].mxu0
  %268 = vmatprep.mubr.bf16.mxu0 0
  %269 = vmatmul.mubr.bf16.gmra.mrb[0].mxu0 %v174
  %v270 = vpop.f32.mrb[0].mxu0
  %v271 = vadd.f32 %v75, %v270
  %v272 = vpop.f32.mrb[0].mxu0
  %v273 = vpop.f32.mrb[0].mxu0
  %v274 = vadd.f32 %v75, %v273
  %v275 = vpop.f32.mrb[0].mxu0
  %276 = vmatprep.mubr.bf16.mxu0 0
  %277 = vmatmul.mubr.bf16.gmra.mrb[0].mxu0 %v177
  %v278 = vpop.f32.mrb[0].mxu0
  %v279 = vadd.f32 %v75, %v278
  %v280 = vpop.f32.mrb[0].mxu0
  %v281 = vpop.f32.mrb[0].mxu0
  %v282 = vadd.f32 %v75, %v281
  %v283 = vpop.f32.mrb[0].mxu0
  %284 = vmatprep.mubr.bf16.mxu0 0
  %285 = vmatmul.mubr.bf16.gmra.mrb[0].mxu0 %v180
  %v286 = vpop.f32.mrb[0].mxu0
  %v287 = vadd.f32 %v75, %v286
  %v288 = vpop.f32.mrb[0].mxu0
  %v289 = vpop.f32.mrb[0].mxu0
  %v290 = vadd.f32 %v75, %v289
  %v291 = vpop.f32.mrb[0].mxu0
  %292 = vmatprep.mubr.bf16.mxu0 0
  %293 = vmatmul.mubr.bf16.gmra.mrb[0].mxu0 %v183
  %v294 = vpop.f32.mrb[0].mxu0
  %v295 = vadd.f32 %v75, %v294
  %v296 = vpop.f32.mrb[0].mxu0
  %v297 = vpop.f32.mrb[0].mxu0
  %v298 = vadd.f32 %v75, %v297
  %v299 = vpop.f32.mrb[0].mxu0
  %300 = vmatprep.mubr.bf16.mxu0 0
  %301 = vmatmul.mubr.bf16.gmra.mrb[0].mxu0 %v186
  %v302 = vpop.f32.mrb[0].mxu0
  %v303 = vadd.f32 %v75, %v302
  %v304 = vpop.f32.mrb[0].mxu0
  %v305 = vpop.f32.mrb[0].mxu0
  %v306 = vadd.f32 %v75, %v305
  %v307 = vpop.f32.mrb[0].mxu0
  %308 = vmatprep.mubr.bf16.mxu0 0
  %309 = vmatmul.mubr.bf16.gmra.mrb[0].mxu0 %v189
  %v310 = vpop.f32.mrb[0].mxu0
  %v311 = vadd.f32 %v75, %v310
  %v312 = vpop.f32.mrb[0].mxu0
  %v313 = vpop.f32.mrb[0].mxu0
  %v314 = vadd.f32 %v75, %v313
  %v315 = vpop.f32.mrb[0].mxu0
  %316 = vmatprep.mubr.bf16.mxu0 0
  %317 = vmatmul.mubr.bf16.gmra.mrb[0].mxu0 %v192
  %v318 = vpop.f32.mrb[0].mxu0
  %v319 = vadd.f32 %v75, %v318
  %v320 = vpop.f32.mrb[0].mxu0
  %v321 = vpop.f32.mrb[0].mxu0
  %v322 = vadd.f32 %v75, %v321
  %v323 = vpop.f32.mrb[0].mxu0
  %324 = vmatprep.mubr.bf16.mxu0 0
  %325 = vmatmul.mubr.bf16.gmra.mrb[0].mxu0 %v195
  %v326 = vpop.f32.mrb[0].mxu0
  %v327 = vadd.f32 %v75, %v326
  %v328 = vpop.f32.mrb[0].mxu0
  %v329 = vpop.f32.mrb[0].mxu0
  %v330 = vadd.f32 %v75, %v329
  %v331 = vpop.f32.mrb[0].mxu0
  %332 = vmatprep.mubr.bf16.mxu0 0
  %333 = vmatmul.mubr.bf16.gmra.mrb[0].mxu0 %v198
  %v334 = vpop.f32.mrb[0].mxu0
  %v335 = vadd.f32 %v75, %v334
  %v336 = vpop.f32.mrb[0].mxu0
  %v337 = vpop.f32.mrb[0].mxu0
  %v338 = vadd.f32 %v75, %v337
  %v339 = vpop.f32.mrb[0].mxu0
  %340 = vmatprep.mubr.bf16.mxu0 0
  %341 = vmatmul.mubr.bf16.gmra.mrb[0].mxu0 %v201
  %v342 = vpop.f32.mrb[0].mxu0
  %v343 = vadd.f32 %v75, %v342
  %v344 = vpop.f32.mrb[0].mxu0
  %v345 = vpop.f32.mrb[0].mxu0
  %v346 = vadd.f32 %v75, %v345
  %v347 = vpop.f32.mrb[0].mxu0
  %348 = vmatprep.mubr.bf16.mxu0 0
  %349 = vmatmul.mubr.bf16.gmra.mrb[0].mxu0 %v204
  %v350 = vpop.f32.mrb[0].mxu0
  %v351 = vadd.f32 %v75, %v350
  %v352 = vpop.f32.mrb[0].mxu0
  %v353 = vpop.f32.mrb[0].mxu0
  %v354 = vadd.f32 %v75, %v353
  %v355 = vpop.f32.mrb[0].mxu0
  %356 = vmatprep.mubr.bf16.mxu0 0
  %357 = vmatmul.mubr.bf16.gmra.mrb[0].mxu0 %v207
  %v358 = vpop.f32.mrb[0].mxu0
  %v359 = vadd.f32 %v75, %v358
  %v360 = vpop.f32.mrb[0].mxu0
  %v361 = vpop.f32.mrb[0].mxu0
  %v362 = vadd.f32 %v75, %v361
  %v363 = vpop.f32.mrb[0].mxu0
  %364 = vmatprep.mubr.bf16.mxu0 0
  %365 = vmatmul.mubr.bf16.gmra.mrb[0].mxu0 %v210
  %v366 = vpop.f32.mrb[0].mxu0
  %v367 = vadd.f32 %v75, %v366
  %v368 = vpop.f32.mrb[0].mxu0
  %v369 = vpop.f32.mrb[0].mxu0
  %v370 = vadd.f32 %v75, %v369
  %v371 = vpop.f32.mrb[0].mxu0
  %372 = vdwg.mxu0
  %vm373 = vcmp.gt.f32.partialorder %v247, 0.0
  %vm374 = vcmp.gt.f32.partialorder %v250, 0.0
  %vm375 = vcmp.gt.f32.partialorder %v255, 0.0
  %vm376 = vcmp.gt.f32.partialorder %v258, 0.0
  %vm377 = vcmp.gt.f32.partialorder %v263, 0.0
  %vm378 = vcmp.gt.f32.partialorder %v266, 0.0
  %vm379 = vcmp.gt.f32.partialorder %v271, 0.0
  %vm380 = vcmp.gt.f32.partialorder %v274, 0.0
  %vm381 = vcmp.gt.f32.partialorder %v279, 0.0
  %vm382 = vcmp.gt.f32.partialorder %v282, 0.0
  %vm383 = vcmp.gt.f32.partialorder %v287, 0.0
  %vm384 = vcmp.gt.f32.partialorder %v290, 0.0
  %vm385 = vcmp.gt.f32.partialorder %v295, 0.0
  %vm386 = vcmp.gt.f32.partialorder %v298, 0.0
  %vm387 = vcmp.gt.f32.partialorder %v303, 0.0
  %vm388 = vcmp.gt.f32.partialorder %v306, 0.0
  %vm389 = vcmp.gt.f32.partialorder %v311, 0.0
  %vm390 = vcmp.gt.f32.partialorder %v314, 0.0
  %vm391 = vcmp.gt.f32.partialorder %v319, 0.0
  %vm392 = vcmp.gt.f32.partialorder %v322, 0.0
  %vm393 = vcmp.gt.f32.partialorder %v327, 0.0
  %vm394 = vcmp.gt.f32.partialorder %v330, 0.0
  %vm395 = vcmp.gt.f32.partialorder %v335, 0.0
  %vm396 = vcmp.gt.f32.partialorder %v338, 0.0
  %vm397 = vcmp.gt.f32.partialorder %v343, 0.0
  %vm398 = vcmp.gt.f32.partialorder %v346, 0.0
  %vm399 = vcmp.gt.f32.partialorder %v351, 0.0
  %vm400 = vcmp.gt.f32.partialorder %v354, 0.0
  %vm401 = vcmp.gt.f32.partialorder %v359, 0.0
  %vm402 = vcmp.gt.f32.partialorder %v362, 0.0
  %vm403 = vcmp.gt.f32.partialorder %v367, 0.0
  %vm404 = vcmp.gt.f32.partialorder %v370, 0.0
  %v405 = vmul.f32 %v247, 0.01
  %v406 = vmul.f32 %v250, 0.01
  %v407 = vmul.f32 %v255, 0.01
  %v408 = vmul.f32 %v258, 0.01
  %v409 = vmul.f32 %v263, 0.01
  %v410 = vmul.f32 %v266, 0.01
  %v411 = vmul.f32 %v271, 0.01
  %v412 = vmul.f32 %v274, 0.01
  %v413 = vmul.f32 %v279, 0.01
  %v414 = vmul.f32 %v282, 0.01
  %v415 = vmul.f32 %v287, 0.01
  %v416 = vmul.f32 %v290, 0.01
  %v417 = vmul.f32 %v295, 0.01
  %v418 = vmul.f32 %v298, 0.01
  %v419 = vmul.f32 %v303, 0.01
  %v420 = vmul.f32 %v306, 0.01
  %v421 = vmul.f32 %v311, 0.01
  %v422 = vmul.f32 %v314, 0.01
  %v423 = vmul.f32 %v319, 0.01
  %v424 = vmul.f32 %v322, 0.01
  %v425 = vmul.f32 %v327, 0.01
  %v426 = vmul.f32 %v330, 0.01
  %v427 = vmul.f32 %v335, 0.01
  %v428 = vmul.f32 %v338, 0.01
  %v429 = vmul.f32 %v343, 0.01
  %v430 = vmul.f32 %v346, 0.01
  %v431 = vmul.f32 %v351, 0.01
  %v432 = vmul.f32 %v354, 0.01
  %v433 = vmul.f32 %v359, 0.01
  %v434 = vmul.f32 %v362, 0.01
  %v435 = vmul.f32 %v367, 0.01
  %v436 = vmul.f32 %v370, 0.01
  %v437 = vsel %vm373, %v247, %v405
  %v438 = vsel %vm374, %v250, %v406
  %v439 = vsel %vm375, %v255, %v407
  %v440 = vsel %vm376, %v258, %v408
  %v441 = vsel %vm377, %v263, %v409
  %v442 = vsel %vm378, %v266, %v410
  %v443 = vsel %vm379, %v271, %v411
  %v444 = vsel %vm380, %v274, %v412
  %v445 = vsel %vm381, %v279, %v413
  %v446 = vsel %vm382, %v282, %v414
  %v447 = vsel %vm383, %v287, %v415
  %v448 = vsel %vm384, %v290, %v416
  %v449 = vsel %vm385, %v295, %v417
  %v450 = vsel %vm386, %v298, %v418
  %v451 = vsel %vm387, %v303, %v419
  %v452 = vsel %vm388, %v306, %v420
  %v453 = vsel %vm389, %v311, %v421
  %v454 = vsel %vm390, %v314, %v422
  %v455 = vsel %vm391, %v319, %v423
  %v456 = vsel %vm392, %v322, %v424
  %v457 = vsel %vm393, %v327, %v425
  %v458 = vsel %vm394, %v330, %v426
  %v459 = vsel %vm395, %v335, %v427
  %v460 = vsel %vm396, %v338, %v428
  %v461 = vsel %vm397, %v343, %v429
  %v462 = vsel %vm398, %v346, %v430
  %v463 = vsel %vm399, %v351, %v431
  %v464 = vsel %vm400, %v354, %v432
  %v465 = vsel %vm401, %v359, %v433
  %v466 = vsel %vm402, %v362, %v434
  %v467 = vsel %vm403, %v367, %v435
  %v468 = vsel %vm404, %v370, %v436
  %v469 = vld [vmem:[%s1] sm:$0xf]
  %v470 = vld [vmem:[%s1 + $0x4] sm:$0xf]
  %v471 = vld [vmem:[%s1 + $0x8] sm:$0xf]
  %v472 = vld [vmem:[%s1 + $0xc] sm:$0xf]
  %v473 = vld [vmem:[%s1 + $0x10] sm:$0xf]
  %v474 = vld [vmem:[%s1 + $0x14] sm:$0xf]
  %v475 = vld [vmem:[%s1 + $0x18] sm:$0xf]
  %v476 = vld [vmem:[%s1 + $0x1c] sm:$0xf]
  %v477 = vld [vmem:[%s1 + $0x20] sm:$0xf]
  %v478 = vld [vmem:[%s1 + $0x24] sm:$0xf]
  %v479 = vld [vmem:[%s1 + $0x28] sm:$0xf]
  %v480 = vld [vmem:[%s1 + $0x2c] sm:$0xf]
  %v481 = vld [vmem:[%s1 + $0x30] sm:$0xf]
  %v482 = vld [vmem:[%s1 + $0x34] sm:$0xf]
  %v483 = vld [vmem:[%s1 + $0x38] sm:$0xf]
  %v484 = vld [vmem:[%s1 + $0x3c] sm:$0xf]
  %v485 = vpack.c.bf16 %v438, %v437
  %v486 = vpack.c.bf16 %v440, %v439
  %v487 = vpack.c.bf16 %v442, %v441
  %v488 = vpack.c.bf16 %v444, %v443
  %v489 = vpack.c.bf16 %v446, %v445
  %v490 = vpack.c.bf16 %v448, %v447
  %v491 = vpack.c.bf16 %v450, %v449
  %v492 = vpack.c.bf16 %v452, %v451
  %v493 = vld [vmem:[%s4] sm:$0xf]
  %v494 = vld [vmem:[%s4 + $0x4] sm:$0xf]
  %v495 = vld [vmem:[%s4 + $0x8] sm:$0xf]
  %v496 = vld [vmem:[%s4 + $0xc] sm:$0xf]
  %v497 = vld [vmem:[%s4 + $0x10] sm:$0xf]
  %v498 = vld [vmem:[%s4 + $0x14] sm:$0xf]
  %v499 = vld [vmem:[%s4 + $0x18] sm:$0xf]
  %v500 = vld [vmem:[%s4 + $0x1c] sm:$0xf]
  %v501 = vld [vmem:[%s4 + $0x20] sm:$0xf]
  %v502 = vld [vmem:[%s4 + $0x24] sm:$0xf]
  %v503 = vld [vmem:[%s4 + $0x28] sm:$0xf]
  %v504 = vld [vmem:[%s4 + $0x2c] sm:$0xf]
  %v505 = vld [vmem:[%s4 + $0x30] sm:$0xf]
  %v506 = vld [vmem:[%s4 + $0x34] sm:$0xf]
  %v507 = vld [vmem:[%s4 + $0x38] sm:$0xf]
  %v508 = vld [vmem:[%s4 + $0x3c] sm:$0xf]
  %v525 = vunpack.c.l.b16 %v493
  %v526 = vunpack.c.l.b16 %v494
  %v527 = vunpack.c.l.b16 %v495
  %v528 = vunpack.c.l.b16 %v496
  %v529 = vunpack.c.l.b16 %v497
  %v530 = vunpack.c.l.b16 %v498
  %v531 = vunpack.c.l.b16 %v499
  %v532 = vunpack.c.l.b16 %v500
  %v533 = vunpack.c.l.b16 %v501
  %v534 = vunpack.c.l.b16 %v502
  %v535 = vunpack.c.l.b16 %v503
  %v536 = vunpack.c.l.b16 %v504
  %v537 = vunpack.c.l.b16 %v505
  %v538 = vunpack.c.l.b16 %v506
  %v539 = vunpack.c.l.b16 %v507
  %v540 = vunpack.c.l.b16 %v508
  %v541 = vpack.c.b16 %v526, %v525
  %v542 = vpack.c.b16 %v528, %v527
  %v543 = vpack.c.b16 %v530, %v529
  %v544 = vpack.c.b16 %v532, %v531
  %v545 = vpack.c.b16 %v534, %v533
  %v546 = vpack.c.b16 %v536, %v535
  %v547 = vpack.c.b16 %v538, %v537
  %v548 = vpack.c.b16 %v540, %v539
  %557 = vmatprep.subr.bf16.mxu0 0
  %558 = vmatpush1.bf16.msra.mxu0 %v541
  %559 = vmatprep.subr.bf16.mxu0 0
  %560 = vmatpush1.bf16.msra.mxu0 %v542
  %561 = vmatprep.subr.bf16.mxu0 0
  %562 = vmatpush1.bf16.msra.mxu0 %v543
  %563 = vmatprep.subr.bf16.mxu0 0
  %564 = vmatpush1.bf16.msra.mxu0 %v544
  %565 = vmatprep.subr.bf16.mxu0 0
  %566 = vmatpush1.bf16.msra.mxu0 %v545
  %567 = vmatprep.subr.bf16.mxu0 0
  %568 = vmatpush1.bf16.msra.mxu0 %v546
  %569 = vmatprep.subr.bf16.mxu0 0
  %570 = vmatpush1.bf16.msra.mxu0 %v547
  %571 = vmatprep.subr.bf16.mxu0 0
  %572 = vmatpush1.bf16.msra.mxu0 %v548
  %573 = vmatprep.subr.bf16.mxu0 0
  %574 = vmatpush1.bf16.msra.mxu0 0
  %575 = vmatprep.subr.bf16.mxu0 0
  %576 = vmatpush1.bf16.msra.mxu0 0
  %577 = vmatprep.subr.bf16.mxu0 0
  %578 = vmatpush1.bf16.msra.mxu0 0
  %579 = vmatprep.subr.bf16.mxu0 0
  %580 = vmatpush1.bf16.msra.mxu0 0
  %581 = vmatprep.subr.bf16.mxu0 0
  %582 = vmatpush1.bf16.msra.mxu0 0
  %583 = vmatprep.subr.bf16.mxu0 0
  %584 = vmatpush1.bf16.msra.mxu0 0
  %585 = vmatprep.subr.bf16.mxu0 0
  %586 = vmatpush1.bf16.msra.mxu0 0
  %587 = vmatprep.subr.bf16.mxu0 0
  %588 = vmatpush1.bf16.msra.mxu0 0
  %589 = vmatprep.mubr.bf16.mxu0 0
  %590 = vmatmul.mubr.bf16.gmra.mrb[0].mxu0 %v485
  %v591 = vpop.f32.mrb[0].mxu0
  %v592 = vadd.f32 0.0, %v591
  %v593 = vpop.f32.mrb[0].mxu0
  %v594 = vpop.f32.mrb[0].mxu0
  %v595 = vadd.f32 0.0, %v594
  %v596 = vpop.f32.mrb[0].mxu0
  %597 = vmatprep.mubr.bf16.mxu0 0
  %598 = vmatmul.mubr.bf16.gmra.mrb[0].mxu0 %v486
  %v599 = vpop.f32.mrb[0].mxu0
  %v600 = vadd.f32 0.0, %v599
  %v601 = vpop.f32.mrb[0].mxu0
  %v602 = vpop.f32.mrb[0].mxu0
  %v603 = vadd.f32 0.0, %v602
  %v604 = vpop.f32.mrb[0].mxu0
  %605 = vmatprep.mubr.bf16.mxu0 0
  %606 = vmatmul.mubr.bf16.gmra.mrb[0].mxu0 %v487
  %v607 = vpop.f32.mrb[0].mxu0
  %v608 = vadd.f32 0.0, %v607
  %v609 = vpop.f32.mrb[0].mxu0
  %v610 = vpop.f32.mrb[0].mxu0
  %v611 = vadd.f32 0.0, %v610
  %v612 = vpop.f32.mrb[0].mxu0
  %613 = vmatprep.mubr.bf16.mxu0 0
  %614 = vmatmul.mubr.bf16.gmra.mrb[0].mxu0 %v488
  %v615 = vpop.f32.mrb[0].mxu0
  %v616 = vadd.f32 0.0, %v615
  %v617 = vpop.f32.mrb[0].mxu0
  %v618 = vpop.f32.mrb[0].mxu0
  %v619 = vadd.f32 0.0, %v618
  %v620 = vpop.f32.mrb[0].mxu0
  %621 = vmatprep.mubr.bf16.mxu0 0
  %622 = vmatmul.mubr.bf16.gmra.mrb[0].mxu0 %v489
  %v623 = vpop.f32.mrb[0].mxu0
  %v624 = vadd.f32 0.0, %v623
  %v625 = vpop.f32.mrb[0].mxu0
  %v626 = vpop.f32.mrb[0].mxu0
  %v627 = vadd.f32 0.0, %v626
  %v628 = vpop.f32.mrb[0].mxu0
  %629 = vmatprep.mubr.bf16.mxu0 0
  %630 = vmatmul.mubr.bf16.gmra.mrb[0].mxu0 %v490
  %v631 = vpop.f32.mrb[0].mxu0
  %v632 = vadd.f32 0.0, %v631
  %v633 = vpop.f32.mrb[0].mxu0
  %v634 = vpop.f32.mrb[0].mxu0
  %v635 = vadd.f32 0.0, %v634
  %v636 = vpop.f32.mrb[0].mxu0
  %637 = vmatprep.mubr.bf16.mxu0 0
  %638 = vmatmul.mubr.bf16.gmra.mrb[0].mxu0 %v491
  %v639 = vpop.f32.mrb[0].mxu0
  %v640 = vadd.f32 0.0, %v639
  %v641 = vpop.f32.mrb[0].mxu0
  %v642 = vpop.f32.mrb[0].mxu0
  %v643 = vadd.f32 0.0, %v642
  %v644 = vpop.f32.mrb[0].mxu0
  %645 = vmatprep.mubr.bf16.mxu0 0
  %646 = vmatmul.mubr.bf16.gmra.mrb[0].mxu0 %v492
  %v647 = vpop.f32.mrb[0].mxu0
  %v648 = vadd.f32 0.0, %v647
  %v649 = vpop.f32.mrb[0].mxu0
  %v650 = vpop.f32.mrb[0].mxu0
  %v651 = vadd.f32 0.0, %v650
  %v652 = vpop.f32.mrb[0].mxu0
  %653 = vdwg.mxu0
  %v654 = vpack.c.bf16 %v595, %v592
  %v655 = vpack.c.bf16 %v603, %v600
  %v656 = vpack.c.bf16 %v611, %v608
  %v657 = vpack.c.bf16 %v619, %v616
  %v658 = vpack.c.bf16 %v627, %v624
  %v659 = vpack.c.bf16 %v635, %v632
  %v660 = vpack.c.bf16 %v643, %v640
  %v661 = vpack.c.bf16 %v651, %v648
  %v662 = vld [vmem:[%s5] sm:$0x1]
  %v664 = vlaneseq
  %v665 = vshrl.u32 %v664, 7
  %v666 = vsub.s32 0, %v665
  %v667 = vrot.slane %v662, %v666
  %v685 = vunpack.c.l.b16 %v469
  %v686 = vunpack.c.l.b16 %v470
  %v687 = vunpack.c.l.b16 %v471
  %v688 = vunpack.c.l.b16 %v472
  %v689 = vunpack.c.l.b16 %v473
  %v690 = vunpack.c.l.b16 %v474
  %v691 = vunpack.c.l.b16 %v475
  %v692 = vunpack.c.l.b16 %v476
  %v693 = vunpack.c.l.b16 %v477
  %v694 = vunpack.c.l.b16 %v478
  %v695 = vunpack.c.l.b16 %v479
  %v696 = vunpack.c.l.b16 %v480
  %v697 = vunpack.c.l.b16 %v481
  %v698 = vunpack.c.l.b16 %v482
  %v699 = vunpack.c.l.b16 %v483
  %v700 = vunpack.c.l.b16 %v484
  %v701 = vpack.c.b16 %v686, %v685
  %v702 = vpack.c.b16 %v688, %v687
  %v703 = vpack.c.b16 %v690, %v689
  %v704 = vpack.c.b16 %v692, %v691
  %v705 = vpack.c.b16 %v694, %v693
  %v706 = vpack.c.b16 %v696, %v695
  %v707 = vpack.c.b16 %v698, %v697
  %v708 = vpack.c.b16 %v700, %v699
  %717 = vmatprep.subr.bf16.mxu0 0
  %718 = vmatpush1.bf16.msra.mxu0 %v654
  %719 = vmatprep.subr.bf16.mxu0 0
  %720 = vmatpush1.bf16.msra.mxu0 %v655
  %721 = vmatprep.subr.bf16.mxu0 0
  %722 = vmatpush1.bf16.msra.mxu0 %v656
  %723 = vmatprep.subr.bf16.mxu0 0
  %724 = vmatpush1.bf16.msra.mxu0 %v657
  %725 = vmatprep.subr.bf16.mxu0 0
  %726 = vmatpush1.bf16.msra.mxu0 %v658
  %727 = vmatprep.subr.bf16.mxu0 0
  %728 = vmatpush1.bf16.msra.mxu0 %v659
  %729 = vmatprep.subr.bf16.mxu0 0
  %730 = vmatpush1.bf16.msra.mxu0 %v660
  %731 = vmatprep.subr.bf16.mxu0 0
  %732 = vmatpush1.bf16.msra.mxu0 %v661
  %733 = vmatprep.subr.bf16.mxu0 0
  %734 = vmatpush1.bf16.msra.mxu0 0
  %735 = vmatprep.subr.bf16.mxu0 0
  %736 = vmatpush1.bf16.msra.mxu0 0
  %737 = vmatprep.subr.bf16.mxu0 0
  %738 = vmatpush1.bf16.msra.mxu0 0
  %739 = vmatprep.subr.bf16.mxu0 0
  %740 = vmatpush1.bf16.msra.mxu0 0
  %741 = vmatprep.subr.bf16.mxu0 0
  %742 = vmatpush1.bf16.msra.mxu0 0
  %743 = vmatprep.subr.bf16.mxu0 0
  %744 = vmatpush1.bf16.msra.mxu0 0
  %745 = vmatprep.subr.bf16.mxu0 0
  %746 = vmatpush1.bf16.msra.mxu0 0
  %747 = vmatprep.subr.bf16.mxu0 0
  %748 = vmatpush1.bf16.msra.mxu0 0
  %749 = vmatprep.mubr.bf16.mxu0 0
  %750 = vmatmul.mubr.bf16.gmra.mrb[0].mxu0 %v701
  %v751 = vpop.f32.mrb[0].mxu0
  %v752 = vadd.f32 %v667, %v751
  %v753 = vpop.f32.mrb[0].mxu0
  %v754 = vpop.f32.mrb[0].mxu0
  %v755 = vadd.f32 %v667, %v754
  %v756 = vpop.f32.mrb[0].mxu0
  %757 = vmatprep.mubr.bf16.mxu0 0
  %758 = vmatmul.mubr.bf16.gmra.mrb[0].mxu0 %v702
  %v759 = vpop.f32.mrb[0].mxu0
  %v760 = vadd.f32 %v667, %v759
  %v761 = vpop.f32.mrb[0].mxu0
  %v762 = vpop.f32.mrb[0].mxu0
  %v763 = vadd.f32 %v667, %v762
  %v764 = vpop.f32.mrb[0].mxu0
  %765 = vmatprep.mubr.bf16.mxu0 0
  %766 = vmatmul.mubr.bf16.gmra.mrb[0].mxu0 %v703
  %v767 = vpop.f32.mrb[0].mxu0
  %v768 = vadd.f32 %v667, %v767
  %v769 = vpop.f32.mrb[0].mxu0
  %v770 = vpop.f32.mrb[0].mxu0
  %v771 = vadd.f32 %v667, %v770
  %v772 = vpop.f32.mrb[0].mxu0
  %773 = vmatprep.mubr.bf16.mxu0 0
  %774 = vmatmul.mubr.bf16.gmra.mrb[0].mxu0 %v704
  %v775 = vpop.f32.mrb[0].mxu0
  %v776 = vadd.f32 %v667, %v775
  %v777 = vpop.f32.mrb[0].mxu0
  %v778 = vpop.f32.mrb[0].mxu0
  %v779 = vadd.f32 %v667, %v778
  %v780 = vpop.f32.mrb[0].mxu0
  %781 = vmatprep.mubr.bf16.mxu0 0
  %782 = vmatmul.mubr.bf16.gmra.mrb[0].mxu0 %v705
  %v783 = vpop.f32.mrb[0].mxu0
  %v784 = vadd.f32 %v667, %v783
  %v785 = vpop.f32.mrb[0].mxu0
  %v786 = vpop.f32.mrb[0].mxu0
  %v787 = vadd.f32 %v667, %v786
  %v788 = vpop.f32.mrb[0].mxu0
  %789 = vmatprep.mubr.bf16.mxu0 0
  %790 = vmatmul.mubr.bf16.gmra.mrb[0].mxu0 %v706
  %v791 = vpop.f32.mrb[0].mxu0
  %v792 = vadd.f32 %v667, %v791
  %v793 = vpop.f32.mrb[0].mxu0
  %v794 = vpop.f32.mrb[0].mxu0
  %v795 = vadd.f32 %v667, %v794
  %v796 = vpop.f32.mrb[0].mxu0
  %797 = vmatprep.mubr.bf16.mxu0 0
  %798 = vmatmul.mubr.bf16.gmra.mrb[0].mxu0 %v707
  %v799 = vpop.f32.mrb[0].mxu0
  %v800 = vadd.f32 %v667, %v799
  %v801 = vpop.f32.mrb[0].mxu0
  %v802 = vpop.f32.mrb[0].mxu0
  %v803 = vadd.f32 %v667, %v802
  %v804 = vpop.f32.mrb[0].mxu0
  %805 = vmatprep.mubr.bf16.mxu0 0
  %806 = vmatmul.mubr.bf16.gmra.mrb[0].mxu0 %v708
  %v807 = vpop.f32.mrb[0].mxu0
  %v808 = vadd.f32 %v667, %v807
  %v809 = vpop.f32.mrb[0].mxu0
  %v810 = vpop.f32.mrb[0].mxu0
  %v811 = vadd.f32 %v667, %v810
  %v812 = vpop.f32.mrb[0].mxu0
  %813 = vdwg.mxu0
  %v814 = vpack.c.bf16 %v755, %v752
  %v815 = vpack.c.bf16 %v763, %v760
  %v816 = vpack.c.bf16 %v771, %v768
  %v817 = vpack.c.bf16 %v779, %v776
  %v818 = vpack.c.bf16 %v787, %v784
  %v819 = vpack.c.bf16 %v795, %v792
  %v820 = vpack.c.bf16 %v803, %v800
  %v821 = vpack.c.bf16 %v811, %v808
  %v822 = vld [vmem:[%s6] sm:$0xf]
  %v823 = vld [vmem:[%s6 + $0x4] sm:$0xf]
  %v824 = vld [vmem:[%s6 + $0x8] sm:$0xf]
  %v825 = vld [vmem:[%s6 + $0xc] sm:$0xf]
  %v826 = vld [vmem:[%s6 + $0x10] sm:$0xf]
  %v827 = vld [vmem:[%s6 + $0x14] sm:$0xf]
  %v828 = vld [vmem:[%s6 + $0x18] sm:$0xf]
  %v829 = vld [vmem:[%s6 + $0x1c] sm:$0xf]
  %v830 = vld [vmem:[%s6 + $0x20] sm:$0xf]
  %v831 = vld [vmem:[%s6 + $0x24] sm:$0xf]
  %v832 = vld [vmem:[%s6 + $0x28] sm:$0xf]
  %v833 = vld [vmem:[%s6 + $0x2c] sm:$0xf]
  %v834 = vld [vmem:[%s6 + $0x30] sm:$0xf]
  %v835 = vld [vmem:[%s6 + $0x34] sm:$0xf]
  %v836 = vld [vmem:[%s6 + $0x38] sm:$0xf]
  %v837 = vld [vmem:[%s6 + $0x3c] sm:$0xf]
  %v854 = vunpack.c.l.b16 %v822
  %v855 = vunpack.c.l.b16 %v823
  %v856 = vunpack.c.l.b16 %v824
  %v857 = vunpack.c.l.b16 %v825
  %v858 = vunpack.c.l.b16 %v826
  %v859 = vunpack.c.l.b16 %v827
  %v860 = vunpack.c.l.b16 %v828
  %v861 = vunpack.c.l.b16 %v829
  %v862 = vunpack.c.l.b16 %v830
  %v863 = vunpack.c.l.b16 %v831
  %v864 = vunpack.c.l.b16 %v832
  %v865 = vunpack.c.l.b16 %v833
  %v866 = vunpack.c.l.b16 %v834
  %v867 = vunpack.c.l.b16 %v835
  %v868 = vunpack.c.l.b16 %v836
  %v869 = vunpack.c.l.b16 %v837
  %v870 = vpack.c.b16 %v855, %v854
  %v871 = vpack.c.b16 %v857, %v856
  %v872 = vpack.c.b16 %v859, %v858
  %v873 = vpack.c.b16 %v861, %v860
  %v874 = vpack.c.b16 %v863, %v862
  %v875 = vpack.c.b16 %v865, %v864
  %v876 = vpack.c.b16 %v867, %v866
  %v877 = vpack.c.b16 %v869, %v868
  %886 = vmatprep.subr.bf16.mxu0 0
  %887 = vmatpush1.bf16.msra.mxu0 %v870
  %888 = vmatprep.subr.bf16.mxu0 0
  %889 = vmatpush1.bf16.msra.mxu0 %v871
  %890 = vmatprep.subr.bf16.mxu0 0
  %891 = vmatpush1.bf16.msra.mxu0 %v872
  %892 = vmatprep.subr.bf16.mxu0 0
  %893 = vmatpush1.bf16.msra.mxu0 %v873
  %894 = vmatprep.subr.bf16.mxu0 0
  %895 = vmatpush1.bf16.msra.mxu0 %v874
  %896 = vmatprep.subr.bf16.mxu0 0
  %897 = vmatpush1.bf16.msra.mxu0 %v875
  %898 = vmatprep.subr.bf16.mxu0 0
  %899 = vmatpush1.bf16.msra.mxu0 %v876
  %900 = vmatprep.subr.bf16.mxu0 0
  %901 = vmatpush1.bf16.msra.mxu0 %v877
  %902 = vmatprep.subr.bf16.mxu0 0
  %903 = vmatpush1.bf16.msra.mxu0 0
  %904 = vmatprep.subr.bf16.mxu0 0
  %905 = vmatpush1.bf16.msra.mxu0 0
  %906 = vmatprep.subr.bf16.mxu0 0
  %907 = vmatpush1.bf16.msra.mxu0 0
  %908 = vmatprep.subr.bf16.mxu0 0
  %909 = vmatpush1.bf16.msra.mxu0 0
  %910 = vmatprep.subr.bf16.mxu0 0
  %911 = vmatpush1.bf16.msra.mxu0 0
  %912 = vmatprep.subr.bf16.mxu0 0
  %913 = vmatpush1.bf16.msra.mxu0 0
  %914 = vmatprep.subr.bf16.mxu0 0
  %915 = vmatpush1.bf16.msra.mxu0 0
  %916 = vmatprep.subr.bf16.mxu0 0
  %917 = vmatpush1.bf16.msra.mxu0 0
  %918 = vmatprep.mubr.bf16.mxu0 0
  %919 = vmatmul.mubr.bf16.gmra.mrb[0].mxu0 %v814
  %v920 = vpop.f32.mrb[0].mxu0
  %v921 = vadd.f32 0.0, %v920
  %v922 = vpop.f32.mrb[0].mxu0
  %v923 = vpop.f32.mrb[0].mxu0
  %v924 = vadd.f32 0.0, %v923
  %v925 = vpop.f32.mrb[0].mxu0
  %926 = vmatprep.mubr.bf16.mxu0 0
  %927 = vmatmul.mubr.bf16.gmra.mrb[0].mxu0 %v815
  %v928 = vpop.f32.mrb[0].mxu0
  %v929 = vadd.f32 0.0, %v928
  %v930 = vpop.f32.mrb[0].mxu0
  %v931 = vpop.f32.mrb[0].mxu0
  %v932 = vadd.f32 0.0, %v931
  %v933 = vpop.f32.mrb[0].mxu0
  %934 = vmatprep.mubr.bf16.mxu0 0
  %935 = vmatmul.mubr.bf16.gmra.mrb[0].mxu0 %v816
  %v936 = vpop.f32.mrb[0].mxu0
  %v937 = vadd.f32 0.0, %v936
  %v938 = vpop.f32.mrb[0].mxu0
  %v939 = vpop.f32.mrb[0].mxu0
  %v940 = vadd.f32 0.0, %v939
  %v941 = vpop.f32.mrb[0].mxu0
  %942 = vmatprep.mubr.bf16.mxu0 0
  %943 = vmatmul.mubr.bf16.gmra.mrb[0].mxu0 %v817
  %v944 = vpop.f32.mrb[0].mxu0
  %v945 = vadd.f32 0.0, %v944
  %v946 = vpop.f32.mrb[0].mxu0
  %v947 = vpop.f32.mrb[0].mxu0
  %v948 = vadd.f32 0.0, %v947
  %v949 = vpop.f32.mrb[0].mxu0
  %950 = vmatprep.mubr.bf16.mxu0 0
  %951 = vmatmul.mubr.bf16.gmra.mrb[0].mxu0 %v818
  %v952 = vpop.f32.mrb[0].mxu0
  %v953 = vadd.f32 0.0, %v952
  %v954 = vpop.f32.mrb[0].mxu0
  %v955 = vpop.f32.mrb[0].mxu0
  %v956 = vadd.f32 0.0, %v955
  %v957 = vpop.f32.mrb[0].mxu0
  %958 = vmatprep.mubr.bf16.mxu0 0
  %959 = vmatmul.mubr.bf16.gmra.mrb[0].mxu0 %v819
  %v960 = vpop.f32.mrb[0].mxu0
  %v961 = vadd.f32 0.0, %v960
  %v962 = vpop.f32.mrb[0].mxu0
  %v963 = vpop.f32.mrb[0].mxu0
  %v964 = vadd.f32 0.0, %v963
  %v965 = vpop.f32.mrb[0].mxu0
  %966 = vmatprep.mubr.bf16.mxu0 0
  %967 = vmatmul.mubr.bf16.gmra.mrb[0].mxu0 %v820
  %v968 = vpop.f32.mrb[0].mxu0
  %v969 = vadd.f32 0.0, %v968
  %v970 = vpop.f32.mrb[0].mxu0
  %v971 = vpop.f32.mrb[0].mxu0
  %v972 = vadd.f32 0.0, %v971
  %v973 = vpop.f32.mrb[0].mxu0
  %974 = vmatprep.mubr.bf16.mxu0 0
  %975 = vmatmul.mubr.bf16.gmra.mrb[0].mxu0 %v821
  %v976 = vpop.f32.mrb[0].mxu0
  %v977 = vadd.f32 0.0, %v976
  %v978 = vpop.f32.mrb[0].mxu0
  %v979 = vpop.f32.mrb[0].mxu0
  %v980 = vadd.f32 0.0, %v979
  %v981 = vpop.f32.mrb[0].mxu0
  %982 = vdwg.mxu0
  %v983 = vpack.c.bf16 %v924, %v921
  %v984 = vpack.c.bf16 %v932, %v929
  %v985 = vpack.c.bf16 %v940, %v937
  %v986 = vpack.c.bf16 %v948, %v945
  %v987 = vpack.c.bf16 %v956, %v953
  %v988 = vpack.c.bf16 %v964, %v961
  %v989 = vpack.c.bf16 %v972, %v969
  %v990 = vpack.c.bf16 %v980, %v977
  %v991 = vld [vmem:[%s7] sm:$0x1]
  %v993 = vlaneseq
  %v994 = vshrl.u32 %v993, 7
  %v995 = vsub.s32 0, %v994
  %v996 = vrot.slane %v991, %v995
  %998 = vmatprep.subr.bf16.mxu0 0
  %999 = vmatpush1.bf16.msra.mxu0 %v983
  %1000 = vmatprep.subr.bf16.mxu0 0
  %1001 = vmatpush1.bf16.msra.mxu0 %v984
  %1002 = vmatprep.subr.bf16.mxu0 0
  %1003 = vmatpush1.bf16.msra.mxu0 %v985
  %1004 = vmatprep.subr.bf16.mxu0 0
  %1005 = vmatpush1.bf16.msra.mxu0 %v986
  %1006 = vmatprep.subr.bf16.mxu0 0
  %1007 = vmatpush1.bf16.msra.mxu0 %v987
  %1008 = vmatprep.subr.bf16.mxu0 0
  %1009 = vmatpush1.bf16.msra.mxu0 %v988
  %1010 = vmatprep.subr.bf16.mxu0 0
  %1011 = vmatpush1.bf16.msra.mxu0 %v989
  %1012 = vmatprep.subr.bf16.mxu0 0
  %1013 = vmatpush1.bf16.msra.mxu0 %v990
  %1014 = vmatprep.subr.bf16.mxu0 0
  %1015 = vmatpush1.bf16.msra.mxu0 0
  %1016 = vmatprep.subr.bf16.mxu0 0
  %1017 = vmatpush1.bf16.msra.mxu0 0
  %1018 = vmatprep.subr.bf16.mxu0 0
  %1019 = vmatpush1.bf16.msra.mxu0 0
  %1020 = vmatprep.subr.bf16.mxu0 0
  %1021 = vmatpush1.bf16.msra.mxu0 0
  %1022 = vmatprep.subr.bf16.mxu0 0
  %1023 = vmatpush1.bf16.msra.mxu0 0
  %1024 = vmatprep.subr.bf16.mxu0 0
  %1025 = vmatpush1.bf16.msra.mxu0 0
  %1026 = vmatprep.subr.bf16.mxu0 0
  %1027 = vmatpush1.bf16.msra.mxu0 0
  %1028 = vmatprep.subr.bf16.mxu0 0
  %1029 = vmatpush1.bf16.msra.mxu0 0
  %1030 = vmatprep.mubr.bf16.mxu0 0
  %1031 = vmatmul.mubr.bf16.gmra.mrb[0].mxu0 %v701
  %v1032 = vpop.f32.mrb[0].mxu0
  %v1033 = vadd.f32 %v996, %v1032
  %v1034 = vpop.f32.mrb[0].mxu0
  %v1035 = vpop.f32.mrb[0].mxu0
  %v1036 = vadd.f32 %v996, %v1035
  %v1037 = vpop.f32.mrb[0].mxu0
  %1038 = vmatprep.mubr.bf16.mxu0 0
  %1039 = vmatmul.mubr.bf16.gmra.mrb[0].mxu0 %v702
  %v1040 = vpop.f32.mrb[0].mxu0
  %v1041 = vadd.f32 %v996, %v1040
  %v1042 = vpop.f32.mrb[0].mxu0
  %v1043 = vpop.f32.mrb[0].mxu0
  %v1044 = vadd.f32 %v996, %v1043
  %v1045 = vpop.f32.mrb[0].mxu0
  %1046 = vmatprep.mubr.bf16.mxu0 0
  %1047 = vmatmul.mubr.bf16.gmra.mrb[0].mxu0 %v703
  %v1048 = vpop.f32.mrb[0].mxu0
  %v1049 = vadd.f32 %v996, %v1048
  %v1050 = vpop.f32.mrb[0].mxu0
  %v1051 = vpop.f32.mrb[0].mxu0
  %v1052 = vadd.f32 %v996, %v1051
  %v1053 = vpop.f32.mrb[0].mxu0
  %1054 = vmatprep.mubr.bf16.mxu0 0
  %1055 = vmatmul.mubr.bf16.gmra.mrb[0].mxu0 %v704
  %v1056 = vpop.f32.mrb[0].mxu0
  %v1057 = vadd.f32 %v996, %v1056
  %v1058 = vpop.f32.mrb[0].mxu0
  %v1059 = vpop.f32.mrb[0].mxu0
  %v1060 = vadd.f32 %v996, %v1059
  %v1061 = vpop.f32.mrb[0].mxu0
  %1062 = vmatprep.mubr.bf16.mxu0 0
  %1063 = vmatmul.mubr.bf16.gmra.mrb[0].mxu0 %v705
  %v1064 = vpop.f32.mrb[0].mxu0
  %v1065 = vadd.f32 %v996, %v1064
  %v1066 = vpop.f32.mrb[0].mxu0
  %v1067 = vpop.f32.mrb[0].mxu0
  %v1068 = vadd.f32 %v996, %v1067
  %v1069 = vpop.f32.mrb[0].mxu0
  %1070 = vmatprep.mubr.bf16.mxu0 0
  %1071 = vmatmul.mubr.bf16.gmra.mrb[0].mxu0 %v706
  %v1072 = vpop.f32.mrb[0].mxu0
  %v1073 = vadd.f32 %v996, %v1072
  %v1074 = vpop.f32.mrb[0].mxu0
  %v1075 = vpop.f32.mrb[0].mxu0
  %v1076 = vadd.f32 %v996, %v1075
  %v1077 = vpop.f32.mrb[0].mxu0
  %1078 = vmatprep.mubr.bf16.mxu0 0
  %1079 = vmatmul.mubr.bf16.gmra.mrb[0].mxu0 %v707
  %v1080 = vpop.f32.mrb[0].mxu0
  %v1081 = vadd.f32 %v996, %v1080
  %v1082 = vpop.f32.mrb[0].mxu0
  %v1083 = vpop.f32.mrb[0].mxu0
  %v1084 = vadd.f32 %v996, %v1083
  %v1085 = vpop.f32.mrb[0].mxu0
  %1086 = vmatprep.mubr.bf16.mxu0 0
  %1087 = vmatmul.mubr.bf16.gmra.mrb[0].mxu0 %v708
  %v1088 = vpop.f32.mrb[0].mxu0
  %v1089 = vadd.f32 %v996, %v1088
  %v1090 = vpop.f32.mrb[0].mxu0
  %v1091 = vpop.f32.mrb[0].mxu0
  %v1092 = vadd.f32 %v996, %v1091
  %v1093 = vpop.f32.mrb[0].mxu0
  %1094 = vdwg.mxu0
  %v1095 = vpack.c.bf16 %v454, %v453
  %v1096 = vpack.c.bf16 %v456, %v455
  %v1097 = vpack.c.bf16 %v458, %v457
  %v1098 = vpack.c.bf16 %v460, %v459
  %v1099 = vpack.c.bf16 %v462, %v461
  %v1100 = vpack.c.bf16 %v464, %v463
  %v1101 = vpack.c.bf16 %v466, %v465
  %v1102 = vpack.c.bf16 %v468, %v467
  %v1103 = vld [vmem:[%s8] sm:$0xf]
  %v1104 = vld [vmem:[%s8 + $0x4] sm:$0xf]
  %v1105 = vld [vmem:[%s8 + $0x8] sm:$0xf]
  %v1106 = vld [vmem:[%s8 + $0xc] sm:$0xf]
  %v1107 = vld [vmem:[%s8 + $0x10] sm:$0xf]
  %v1108 = vld [vmem:[%s8 + $0x14] sm:$0xf]
  %v1109 = vld [vmem:[%s8 + $0x18] sm:$0xf]
  %v1110 = vld [vmem:[%s8 + $0x1c] sm:$0xf]
  %v1111 = vld [vmem:[%s8 + $0x20] sm:$0xf]
  %v1112 = vld [vmem:[%s8 + $0x24] sm:$0xf]
  %v1113 = vld [vmem:[%s8 + $0x28] sm:$0xf]
  %v1114 = vld [vmem:[%s8 + $0x2c] sm:$0xf]
  %v1115 = vld [vmem:[%s8 + $0x30] sm:$0xf]
  %v1116 = vld [vmem:[%s8 + $0x34] sm:$0xf]
  %v1117 = vld [vmem:[%s8 + $0x38] sm:$0xf]
  %v1118 = vld [vmem:[%s8 + $0x3c] sm:$0xf]
  %v1119 = vld [vmem:[%s9] sm:$0x1]
  %v1121 = vlaneseq
  %v1122 = vshrl.u32 %v1121, 7
  %v1123 = vsub.s32 0, %v1122
  %v1124 = vrot.slane %v1119, %v1123
  %v1142 = vunpack.c.l.b16 %v1103
  %v1143 = vunpack.c.l.b16 %v1104
  %v1144 = vunpack.c.l.b16 %v1105
  %v1145 = vunpack.c.l.b16 %v1106
  %v1146 = vunpack.c.l.b16 %v1107
  %v1147 = vunpack.c.l.b16 %v1108
  %v1148 = vunpack.c.l.b16 %v1109
  %v1149 = vunpack.c.l.b16 %v1110
  %v1150 = vunpack.c.l.b16 %v1111
  %v1151 = vunpack.c.l.b16 %v1112
  %v1152 = vunpack.c.l.b16 %v1113
  %v1153 = vunpack.c.l.b16 %v1114
  %v1154 = vunpack.c.l.b16 %v1115
  %v1155 = vunpack.c.l.b16 %v1116
  %v1156 = vunpack.c.l.b16 %v1117
  %v1157 = vunpack.c.l.b16 %v1118
  %v1158 = vpack.c.b16 %v1143, %v1142
  %v1159 = vpack.c.b16 %v1145, %v1144
  %v1160 = vpack.c.b16 %v1147, %v1146
  %v1161 = vpack.c.b16 %v1149, %v1148
  %v1162 = vpack.c.b16 %v1151, %v1150
  %v1163 = vpack.c.b16 %v1153, %v1152
  %v1164 = vpack.c.b16 %v1155, %v1154
  %v1165 = vpack.c.b16 %v1157, %v1156
  %1174 = vmatprep.subr.bf16.mxu0 0
  %1175 = vmatpush1.bf16.msra.mxu0 %v1158
  %1176 = vmatprep.subr.bf16.mxu0 0
  %1177 = vmatpush1.bf16.msra.mxu0 %v1159
  %1178 = vmatprep.subr.bf16.mxu0 0
  %1179 = vmatpush1.bf16.msra.mxu0 %v1160
  %1180 = vmatprep.subr.bf16.mxu0 0
  %1181 = vmatpush1.bf16.msra.mxu0 %v1161
  %1182 = vmatprep.subr.bf16.mxu0 0
  %1183 = vmatpush1.bf16.msra.mxu0 %v1162
  %1184 = vmatprep.subr.bf16.mxu0 0
  %1185 = vmatpush1.bf16.msra.mxu0 %v1163
  %1186 = vmatprep.subr.bf16.mxu0 0
  %1187 = vmatpush1.bf16.msra.mxu0 %v1164
  %1188 = vmatprep.subr.bf16.mxu0 0
  %1189 = vmatpush1.bf16.msra.mxu0 %v1165
  %1190 = vmatprep.subr.bf16.mxu0 0
  %1191 = vmatpush1.bf16.msra.mxu0 0
  %1192 = vmatprep.subr.bf16.mxu0 0
  %1193 = vmatpush1.bf16.msra.mxu0 0
  %1194 = vmatprep.subr.bf16.mxu0 0
  %1195 = vmatpush1.bf16.msra.mxu0 0
  %1196 = vmatprep.subr.bf16.mxu0 0
  %1197 = vmatpush1.bf16.msra.mxu0 0
  %1198 = vmatprep.subr.bf16.mxu0 0
  %1199 = vmatpush1.bf16.msra.mxu0 0
  %1200 = vmatprep.subr.bf16.mxu0 0
  %1201 = vmatpush1.bf16.msra.mxu0 0
  %1202 = vmatprep.subr.bf16.mxu0 0
  %1203 = vmatpush1.bf16.msra.mxu0 0
  %1204 = vmatprep.subr.bf16.mxu0 0
  %1205 = vmatpush1.bf16.msra.mxu0 0
  %1206 = vmatprep.mubr.bf16.mxu0 0
  %1207 = vmatmul.mubr.bf16.gmra.mrb[0].mxu0 %v1095
  %v1208 = vpop.f32.mrb[0].mxu0
  %v1209 = vadd.f32 %v1124, %v1208
  %v1210 = vpop.f32.mrb[0].mxu0
  %v1211 = vpop.f32.mrb[0].mxu0
  %v1212 = vadd.f32 %v1124, %v1211
  %v1213 = vpop.f32.mrb[0].mxu0
  %1214 = vmatprep.mubr.bf16.mxu0 0
  %1215 = vmatmul.mubr.bf16.gmra.mrb[0].mxu0 %v1096
  %v1216 = vpop.f32.mrb[0].mxu0
  %v1217 = vadd.f32 %v1124, %v1216
  %v1218 = vpop.f32.mrb[0].mxu0
  %v1219 = vpop.f32.mrb[0].mxu0
  %v1220 = vadd.f32 %v1124, %v1219
  %v1221 = vpop.f32.mrb[0].mxu0
  %1222 = vmatprep.mubr.bf16.mxu0 0
  %1223 = vmatmul.mubr.bf16.gmra.mrb[0].mxu0 %v1097
  %v1224 = vpop.f32.mrb[0].mxu0
  %v1225 = vadd.f32 %v1124, %v1224
  %v1226 = vpop.f32.mrb[0].mxu0
  %v1227 = vpop.f32.mrb[0].mxu0
  %v1228 = vadd.f32 %v1124, %v1227
  %v1229 = vpop.f32.mrb[0].mxu0
  %1230 = vmatprep.mubr.bf16.mxu0 0
  %1231 = vmatmul.mubr.bf16.gmra.mrb[0].mxu0 %v1098
  %v1232 = vpop.f32.mrb[0].mxu0
  %v1233 = vadd.f32 %v1124, %v1232
  %v1234 = vpop.f32.mrb[0].mxu0
  %v1235 = vpop.f32.mrb[0].mxu0
  %v1236 = vadd.f32 %v1124, %v1235
  %v1237 = vpop.f32.mrb[0].mxu0
  %1238 = vmatprep.mubr.bf16.mxu0 0
  %1239 = vmatmul.mubr.bf16.gmra.mrb[0].mxu0 %v1099
  %v1240 = vpop.f32.mrb[0].mxu0
  %v1241 = vadd.f32 %v1124, %v1240
  %v1242 = vpop.f32.mrb[0].mxu0
  %v1243 = vpop.f32.mrb[0].mxu0
  %v1244 = vadd.f32 %v1124, %v1243
  %v1245 = vpop.f32.mrb[0].mxu0
  %1246 = vmatprep.mubr.bf16.mxu0 0
  %1247 = vmatmul.mubr.bf16.gmra.mrb[0].mxu0 %v1100
  %v1248 = vpop.f32.mrb[0].mxu0
  %v1249 = vadd.f32 %v1124, %v1248
  %v1250 = vpop.f32.mrb[0].mxu0
  %v1251 = vpop.f32.mrb[0].mxu0
  %v1252 = vadd.f32 %v1124, %v1251
  %v1253 = vpop.f32.mrb[0].mxu0
  %1254 = vmatprep.mubr.bf16.mxu0 0
  %1255 = vmatmul.mubr.bf16.gmra.mrb[0].mxu0 %v1101
  %v1256 = vpop.f32.mrb[0].mxu0
  %v1257 = vadd.f32 %v1124, %v1256
  %v1258 = vpop.f32.mrb[0].mxu0
  %v1259 = vpop.f32.mrb[0].mxu0
  %v1260 = vadd.f32 %v1124, %v1259
  %v1261 = vpop.f32.mrb[0].mxu0
  %1262 = vmatprep.mubr.bf16.mxu0 0
  %1263 = vmatmul.mubr.bf16.gmra.mrb[0].mxu0 %v1102
  %v1264 = vpop.f32.mrb[0].mxu0
  %v1265 = vadd.f32 %v1124, %v1264
  %v1266 = vpop.f32.mrb[0].mxu0
  %v1267 = vpop.f32.mrb[0].mxu0
  %v1268 = vadd.f32 %v1124, %v1267
  %v1269 = vpop.f32.mrb[0].mxu0
  %1270 = vdwg.mxu0
  %v1271 = vmul.f32 %v1033, %v1209
  %v1272 = vmul.f32 %v1036, %v1212
  %v1273 = vmul.f32 %v1041, %v1217
  %v1274 = vmul.f32 %v1044, %v1220
  %v1275 = vmul.f32 %v1049, %v1225
  %v1276 = vmul.f32 %v1052, %v1228
  %v1277 = vmul.f32 %v1057, %v1233
  %v1278 = vmul.f32 %v1060, %v1236
  %v1279 = vmul.f32 %v1065, %v1241
  %v1280 = vmul.f32 %v1068, %v1244
  %v1281 = vmul.f32 %v1073, %v1249
  %v1282 = vmul.f32 %v1076, %v1252
  %v1283 = vmul.f32 %v1081, %v1257
  %v1284 = vmul.f32 %v1084, %v1260
  %v1285 = vmul.f32 %v1089, %v1265
  %v1286 = vmul.f32 %v1092, %v1268
  %vm1287 = vcmask 15360
  %1288 = vst.msk [vmem:[%s10] sm:$0xff] %vm1287, %v1271
  %1289 = vst.msk [vmem:[%s10 + $0x8] sm:$0xff] %vm1287, %v1272
  %1290 = vst.msk [vmem:[%s10 + $0x10] sm:$0xff] %vm1287, %v1273
  %1291 = vst.msk [vmem:[%s10 + $0x18] sm:$0xff] %vm1287, %v1274
  %1292 = vst.msk [vmem:[%s10 + $0x20] sm:$0xff] %vm1287, %v1275
  %1293 = vst.msk [vmem:[%s10 + $0x28] sm:$0xff] %vm1287, %v1276
  %1294 = vst.msk [vmem:[%s10 + $0x30] sm:$0xff] %vm1287, %v1277
  %1295 = vst.msk [vmem:[%s10 + $0x38] sm:$0xff] %vm1287, %v1278
  %1296 = vst.msk [vmem:[%s10 + $0x40] sm:$0xff] %vm1287, %v1279
  %1297 = vst.msk [vmem:[%s10 + $0x48] sm:$0xff] %vm1287, %v1280
  %1298 = vst.msk [vmem:[%s10 + $0x50] sm:$0xff] %vm1287, %v1281
  %1299 = vst.msk [vmem:[%s10 + $0x58] sm:$0xff] %vm1287, %v1282
  %1300 = vst.msk [vmem:[%s10 + $0x60] sm:$0xff] %vm1287, %v1283
  %1301 = vst.msk [vmem:[%s10 + $0x68] sm:$0xff] %vm1287, %v1284
  %1302 = vst.msk [vmem:[%s10 + $0x70] sm:$0xff] %vm1287, %v1285
  %1303 = vst.msk [vmem:[%s10 + $0x78] sm:$0xff] %vm1287, %v1286
  // Predicated region
  $region42: #{tpu_custom_call.1} parent=0 // pred_check
    _
  $region43: #{tpu_custom_call.1} parent=0 // pred_check_branch
    %1305 = sbr.rel (0) target = $region45
  $region44: #{tpu_custom_call.1} parent=0 // pred_region
    _
  $region45: #{tpu_custom_call.1} parent=0 // pred_fallthru
    _
  // Predicated region
  $region46: #{tpu_custom_call.1} parent=0 // pred_check
    _
  $region47: #{tpu_custom_call.1} parent=0 // pred_check_branch
    %1307 = sbr.rel (0) target = $region49
  $region48: #{tpu_custom_call.1} parent=0 // pred_region
    _
  $region49: #{tpu_custom_call.1} parent=0 // pred_fallthru
    _

</llo_original>
